<compile_context>
chip_gen: v7x
topology: tpu7x:2x2x1
jax: 0.10.0
libtpu: 0.0.40
codegen_flags: <defaults>
</compile_context>

<pallas_src>
import functools

import jax
import jax.numpy as jnp
import numpy as np
from jax.experimental import pallas as pl
from jax.experimental.pallas import tpu as pltpu

_LANE = 128


def _round_up(x, m):
    return ((x + m - 1) // m) * m


def _proposed_loss_kernel(scales_ref, slab_ref, out_ref, acc_ref, *,
                          batch, compute_trans, compute_rot):
    """scales in SMEM (2,), slab block (14, tile_b) in VMEM, scalar out in SMEM.

    acc_ref: SMEM (2,) f32 scratch -> [sum_smooth_l1, sum_quat_dist].
    """
    pid = pl.program_id(0)

    @pl.when(pid == 0)
    def _init():
        acc_ref[0] = jnp.float32(0.0)
        acc_ref[1] = jnp.float32(0.0)

    # ---- translation branch: SmoothL1(beta=1), elementwise; accumulate raw sum.
    if compute_trans:
        diff = slab_ref[3:6, :] - slab_ref[0:3, :]          # (3, tile_b)
        ad = jnp.abs(diff)
        sl1 = jnp.where(ad < 1.0, 0.5 * diff * diff, ad - 0.5)
        acc_ref[0] = acc_ref[0] + jnp.sum(sl1)

    # ---- rotation branch: 2 * atan2(||vec(q * r^-1)||, |w(q * r^-1)|); raw sum.
    if compute_rot:
        # r = quatinv(target_rot) -> conjugate (negate vector part).
        r0 = slab_ref[6:7, :]
        r1 = -slab_ref[7:8, :]
        r2 = -slab_ref[8:9, :]
        r3 = -slab_ref[9:10, :]
        # q = rot_err
        q0 = slab_ref[10:11, :]
        q1 = slab_ref[11:12, :]
        q2 = slab_ref[12:13, :]
        q3 = slab_ref[13:14, :]
        # t = quatmultiply(q, quatinv(r))   (lane-dense: each component is a row)
        t0 = r0 * q0 - r1 * q1 - r2 * q2 - r3 * q3
        t1 = r0 * q1 + r1 * q0 - r2 * q3 + r3 * q2
        t2 = r0 * q2 + r1 * q3 + r2 * q0 - r3 * q1
        t3 = r0 * q3 - r1 * q2 + r2 * q1 + r3 * q0
        vec_norm = jnp.sqrt(t1 * t1 + t2 * t2 + t3 * t3)
        dist = 2.0 * jnp.arctan2(vec_norm, jnp.abs(t0))
        acc_ref[1] = acc_ref[1] + jnp.sum(dist)

    # ---- epilogue: hoisted rescale + single divide by the true batch size.
    @pl.when(pid == pl.num_programs(0) - 1)
    def _finalize():
        total = jnp.float32(0.0)
        if compute_trans:
            total = total + scales_ref[0] * acc_ref[0]
        if compute_rot:
            total = total + scales_ref[1] * acc_ref[1]
        out_ref[0] = total / jnp.float32(batch)


def _build_slab(target_transl, target_rot, transl_err, rot_err, b_pad):
    """Pack inputs into one component-major, lane-dense (14, b_pad) f32 slab."""
    f32 = jnp.float32
    tt = jnp.asarray(target_transl, f32).T      # (3, B)
    te = jnp.asarray(transl_err, f32).T         # (3, B)
    tr = jnp.asarray(target_rot, f32).T         # (4, B)
    re = jnp.asarray(rot_err, f32).T            # (4, B)
    slab = jnp.concatenate([tt, te, tr, re], axis=0)   # (14, B)
    pad = b_pad - slab.shape[1]
    if pad > 0:
        pad_block = jnp.zeros((14, pad), f32)
        # Identity quaternions in the padded columns -> zero rotation distance;
        # zero translations -> zero SmoothL1.  Padding contributes nothing.
        pad_block = pad_block.at[6, :].set(1.0)   # target_rot w
        pad_block = pad_block.at[10, :].set(1.0)  # rot_err w
        slab = jnp.concatenate([slab, pad_block], axis=1)
    return slab


def proposed_loss(target_transl, target_rot, transl_err, rot_err,
                  rescale_trans=1.0, rescale_rot=1.0, tile_b=8192):
    batch = target_transl.shape[0]

    # Lane-dense tile: multiple of 128, no bigger than the (padded) batch.
    tile_b = int(tile_b)
    tile_b = max(_LANE, (min(tile_b, _round_up(batch, _LANE)) // _LANE) * _LANE)
    b_pad = _round_up(batch, tile_b)
    num_blocks = b_pad // tile_b

    slab = _build_slab(target_transl, target_rot, transl_err, rot_err, b_pad)
    scales = jnp.array([rescale_trans, rescale_rot], jnp.float32)

    kernel = functools.partial(
        _proposed_loss_kernel,
        batch=batch,
        compute_trans=(float(rescale_trans) != 0.0),
        compute_rot=(float(rescale_rot) != 0.0),
    )

    out = pl.pallas_call(
        kernel,
        out_shape=jax.ShapeDtypeStruct((1,), jnp.float32),
        grid=(num_blocks,),
        in_specs=[
            # loss weights: whole (2,) array in SMEM every step
            pl.BlockSpec(memory_space=pltpu.MemorySpace.SMEM),
            # packed slab: lane-dense (14, tile_b) tiles marching over batch
            pl.BlockSpec((14, tile_b), lambda i: (0, i)),
        ],
        out_specs=pl.BlockSpec(memory_space=pltpu.MemorySpace.SMEM),
        scratch_shapes=[pltpu.SMEM((2,), jnp.float32)],
        compiler_params=pltpu.CompilerParams(
            dimension_semantics=("arbitrary",)),
    )(scales, slab)
    return out[0]


def _reference_loss(target_transl, target_rot, transl_err, rot_err,
                    rescale_trans, rescale_rot):
    """Pure-JAX reference mirroring the PyTorch module."""
    diff = transl_err - target_transl
    ad = jnp.abs(diff)
    sl1 = jnp.where(ad < 1.0, 0.5 * diff * diff, ad - 0.5)
    loss_transl = jnp.mean(jnp.sum(sl1, axis=1))

    q, r = rot_err, target_rot
    r = r * jnp.array([1.0, -1.0, -1.0, -1.0], jnp.float32)  # quatinv
    t0 = r[:, 0] * q[:, 0] - r[:, 1] * q[:, 1] - r[:, 2] * q[:, 2] - r[:, 3] * q[:, 3]
    t1 = r[:, 0] * q[:, 1] + r[:, 1] * q[:, 0] - r[:, 2] * q[:, 3] + r[:, 3] * q[:, 2]
    t2 = r[:, 0] * q[:, 2] + r[:, 1] * q[:, 3] + r[:, 2] * q[:, 0] - r[:, 3] * q[:, 1]
    t3 = r[:, 0] * q[:, 3] - r[:, 1] * q[:, 2] + r[:, 2] * q[:, 1] + r[:, 3] * q[:, 0]
    dist = 2.0 * jnp.arctan2(jnp.sqrt(t1 * t1 + t2 * t2 + t3 * t3), jnp.abs(t0))
    loss_rot = jnp.mean(dist)
    return rescale_trans * loss_transl + rescale_rot * loss_rot


def _make_inputs(key, batch):
    k1, k2, k3, k4 = jax.random.split(key, 4)
    target_transl = jax.random.normal(k1, (batch, 3), jnp.float32)
    transl_err = jax.random.normal(k2, (batch, 3), jnp.float32)

    def unit_quat(k):
        q = jax.random.normal(k, (batch, 4), jnp.float32)
        return q / jnp.linalg.norm(q, axis=1, keepdims=True)

    return target_transl, unit_quat(k3), transl_err, unit_quat(k4)


if __name__ == "__main__":
    rescale_trans = 1.0
    rescale_rot = 1.0
    key = jax.random.PRNGKey(0)

    # Case 1: small batch (single padded 128-lane tile).
    tt, tr, te, re = _make_inputs(key, 8)
    out = proposed_loss(tt, tr, te, re, rescale_trans, rescale_rot)
    out = jax.block_until_ready(out)
    ref = _reference_loss(tt, tr, te, re, rescale_trans, rescale_rot)
    if not np.allclose(np.asarray(out), np.asarray(ref), rtol=1e-5, atol=1e-5):
        raise AssertionError(f"mismatch (B=8): kernel={out} ref={ref}")

    # Case 2: non-multiple-of-128 batch with a forced small tile -> exercises
    # lane padding and the multi-step grid accumulation path.
    key2 = jax.random.PRNGKey(0)
    tt, tr, te, re = _make_inputs(key2, 300)
    out2 = proposed_loss(tt, tr, te, re, rescale_trans, rescale_rot, tile_b=128)
    out2 = jax.block_until_ready(out2)
    ref2 = _reference_loss(tt, tr, te, re, rescale_trans, rescale_rot)
    if not np.allclose(np.asarray(out2), np.asarray(ref2), rtol=1e-5, atol=1e-5):
        raise AssertionError(f"mismatch (B=300): kernel={out2} ref={ref2}")

    print("KERNEL_OK")
</pallas_src>

<mosaic_0001>
module attributes {stable_mosaic.version = 11 : i64} {
  func.func @_proposed_loss_kernel(%arg0: i32, %arg1: memref<2xf32, #tpu.memory_space<smem>>, %arg2: memref<14x128xf32, #tpu.memory_space<vmem>>, %arg3: memref<1xf32, #tpu.memory_space<smem>>, %arg4: memref<2xf32, #tpu.memory_space<smem>>) attributes {dimension_semantics = [#tpu.dimension_semantics<arbitrary>], iteration_bounds = array<i64: 1>, scalar_prefetch = 0 : i64, scratch_operands = 1 : i64, tpu.core_type = #tpu.core_type<tc>, window_params = [{transform_indices = @transform_0, window_bounds = array<i64: 2>}, {transform_indices = @transform_1, window_bounds = array<i64: 14, 128>}, {transform_indices = @transform_2, window_bounds = array<i64: 1>}]} {
    %c0_i32 = arith.constant 0 : i32
    %0 = arith.cmpi eq, %arg0, %c0_i32 : i32
    %1 = arith.extui %0 : i1 to i32
    %c0_i32_0 = arith.constant 0 : i32
    %2 = arith.cmpi ne, %1, %c0_i32_0 : i32
    scf.if %2 {
      %cst_24 = arith.constant 0.000000e+00 : f32
      %c0_25 = arith.constant 0 : index
      %84 = memref.load %arg4[%c0_25] : memref<2xf32, #tpu.memory_space<smem>>
      memref.store %cst_24, %arg4[%c0_25] : memref<2xf32, #tpu.memory_space<smem>>
      %cst_26 = arith.constant 0.000000e+00 : f32
      %c1_27 = arith.constant 1 : index
      %85 = memref.load %arg4[%c1_27] : memref<2xf32, #tpu.memory_space<smem>>
      memref.store %cst_26, %arg4[%c1_27] : memref<2xf32, #tpu.memory_space<smem>>
    } else {
    }
    %c3 = arith.constant 3 : index
    %c0 = arith.constant 0 : index
    %3 = vector.load %arg2[%c3, %c0] : memref<14x128xf32, #tpu.memory_space<vmem>>, vector<3x128xf32>
    %c0_1 = arith.constant 0 : index
    %c0_2 = arith.constant 0 : index
    %4 = vector.load %arg2[%c0_1, %c0_2] : memref<14x128xf32, #tpu.memory_space<vmem>>, vector<3x128xf32>
    %5 = arith.subf %3, %4 : vector<3x128xf32>
    %6 = math.absf %5 : vector<3x128xf32>
    %cst = arith.constant 1.000000e+00 : f32
    %7 = vector.broadcast %cst : f32 to vector<3x128xf32>
    %8 = arith.cmpf olt, %6, %7 : vector<3x128xf32>
    %cst_3 = arith.constant 5.000000e-01 : f32
    %9 = vector.broadcast %cst_3 : f32 to vector<3x128xf32>
    %10 = arith.mulf %9, %5 : vector<3x128xf32>
    %11 = arith.mulf %10, %5 : vector<3x128xf32>
    %cst_4 = arith.constant 5.000000e-01 : f32
    %12 = vector.broadcast %cst_4 : f32 to vector<3x128xf32>
    %13 = arith.subf %6, %12 : vector<3x128xf32>
    %14 = arith.select %8, %11, %13 : vector<3x128xi1>, vector<3x128xf32>
    %c0_5 = arith.constant 0 : index
    %15 = memref.load %arg4[%c0_5] : memref<2xf32, #tpu.memory_space<smem>>
    %16 = vector.shape_cast %14 : vector<3x128xf32> to vector<1x3x128xf32>
    %cst_6 = arith.constant dense<0.000000e+00> : vector<1xf32>
    %17 = vector.multi_reduction <add>, %16, %cst_6 [1, 2] : vector<1x3x128xf32> to vector<1xf32>
    %18 = vector.shape_cast %17 : vector<1xf32> to vector<1x1x1xf32>
    %19 = vector.extract %18[0, 0, 0] : f32 from vector<1x1x1xf32>
    %20 = arith.addf %15, %19 : f32
    %c0_7 = arith.constant 0 : index
    %21 = memref.load %arg4[%c0_7] : memref<2xf32, #tpu.memory_space<smem>>
    memref.store %20, %arg4[%c0_7] : memref<2xf32, #tpu.memory_space<smem>>
    %c6 = arith.constant 6 : index
    %c0_8 = arith.constant 0 : index
    %22 = vector.load %arg2[%c6, %c0_8] : memref<14x128xf32, #tpu.memory_space<vmem>>, vector<1x128xf32>
    %c7 = arith.constant 7 : index
    %c0_9 = arith.constant 0 : index
    %23 = vector.load %arg2[%c7, %c0_9] : memref<14x128xf32, #tpu.memory_space<vmem>>, vector<1x128xf32>
    %cst_10 = arith.constant 0.000000e+00 : f32
    %24 = vector.broadcast %cst_10 : f32 to vector<1x128xf32>
    %25 = arith.subf %24, %23 : vector<1x128xf32>
    %c8 = arith.constant 8 : index
    %c0_11 = arith.constant 0 : index
    %26 = vector.load %arg2[%c8, %c0_11] : memref<14x128xf32, #tpu.memory_space<vmem>>, vector<1x128xf32>
    %cst_12 = arith.constant 0.000000e+00 : f32
    %27 = vector.broadcast %cst_12 : f32 to vector<1x128xf32>
    %28 = arith.subf %27, %26 : vector<1x128xf32>
    %c9 = arith.constant 9 : index
    %c0_13 = arith.constant 0 : index
    %29 = vector.load %arg2[%c9, %c0_13] : memref<14x128xf32, #tpu.memory_space<vmem>>, vector<1x128xf32>
    %cst_14 = arith.constant 0.000000e+00 : f32
    %30 = vector.broadcast %cst_14 : f32 to vector<1x128xf32>
    %31 = arith.subf %30, %29 : vector<1x128xf32>
    %c10 = arith.constant 10 : index
    %c0_15 = arith.constant 0 : index
    %32 = vector.load %arg2[%c10, %c0_15] : memref<14x128xf32, #tpu.memory_space<vmem>>, vector<1x128xf32>
    %c11 = arith.constant 11 : index
    %c0_16 = arith.constant 0 : index
    %33 = vector.load %arg2[%c11, %c0_16] : memref<14x128xf32, #tpu.memory_space<vmem>>, vector<1x128xf32>
    %c12 = arith.constant 12 : index
    %c0_17 = arith.constant 0 : index
    %34 = vector.load %arg2[%c12, %c0_17] : memref<14x128xf32, #tpu.memory_space<vmem>>, vector<1x128xf32>
    %c13 = arith.constant 13 : index
    %c0_18 = arith.constant 0 : index
    %35 = vector.load %arg2[%c13, %c0_18] : memref<14x128xf32, #tpu.memory_space<vmem>>, vector<1x128xf32>
    %36 = arith.mulf %22, %32 : vector<1x128xf32>
    %37 = arith.mulf %25, %33 : vector<1x128xf32>
    %38 = arith.subf %36, %37 : vector<1x128xf32>
    %39 = arith.mulf %28, %34 : vector<1x128xf32>
    %40 = arith.subf %38, %39 : vector<1x128xf32>
    %41 = arith.mulf %31, %35 : vector<1x128xf32>
    %42 = arith.subf %40, %41 : vector<1x128xf32>
    %43 = arith.mulf %22, %33 : vector<1x128xf32>
    %44 = arith.mulf %25, %32 : vector<1x128xf32>
    %45 = arith.addf %43, %44 : vector<1x128xf32>
    %46 = arith.mulf %28, %35 : vector<1x128xf32>
    %47 = arith.subf %45, %46 : vector<1x128xf32>
    %48 = arith.mulf %31, %34 : vector<1x128xf32>
    %49 = arith.addf %47, %48 : vector<1x128xf32>
    %50 = arith.mulf %22, %34 : vector<1x128xf32>
    %51 = arith.mulf %25, %35 : vector<1x128xf32>
    %52 = arith.addf %50, %51 : vector<1x128xf32>
    %53 = arith.mulf %28, %32 : vector<1x128xf32>
    %54 = arith.addf %52, %53 : vector<1x128xf32>
    %55 = arith.mulf %31, %33 : vector<1x128xf32>
    %56 = arith.subf %54, %55 : vector<1x128xf32>
    %57 = arith.mulf %22, %35 : vector<1x128xf32>
    %58 = arith.mulf %25, %34 : vector<1x128xf32>
    %59 = arith.subf %57, %58 : vector<1x128xf32>
    %60 = arith.mulf %28, %33 : vector<1x128xf32>
    %61 = arith.addf %59, %60 : vector<1x128xf32>
    %62 = arith.mulf %31, %32 : vector<1x128xf32>
    %63 = arith.addf %61, %62 : vector<1x128xf32>
    %64 = arith.mulf %49, %49 : vector<1x128xf32>
    %65 = arith.mulf %56, %56 : vector<1x128xf32>
    %66 = arith.addf %64, %65 : vector<1x128xf32>
    %67 = arith.mulf %63, %63 : vector<1x128xf32>
    %68 = arith.addf %66, %67 : vector<1x128xf32>
    %69 = math.sqrt %68 : vector<1x128xf32>
    %70 = math.absf %42 : vector<1x128xf32>
    %71 = math.atan2 %69, %70 : vector<1x128xf32>
    %cst_19 = arith.constant 2.000000e+00 : f32
    %72 = vector.broadcast %cst_19 : f32 to vector<1x128xf32>
    %73 = arith.mulf %72, %71 : vector<1x128xf32>
    %c1 = arith.constant 1 : index
    %74 = memref.load %arg4[%c1] : memref<2xf32, #tpu.memory_space<smem>>
    %75 = vector.shape_cast %73 : vector<1x128xf32> to vector<1x1x128xf32>
    %cst_20 = arith.constant dense<0.000000e+00> : vector<1xf32>
    %76 = vector.multi_reduction <add>, %75, %cst_20 [1, 2] : vector<1x1x128xf32> to vector<1xf32>
    %77 = vector.shape_cast %76 : vector<1xf32> to vector<1x1x1xf32>
    %78 = vector.extract %77[0, 0, 0] : f32 from vector<1x1x1xf32>
    %79 = arith.addf %74, %78 : f32
    %c1_21 = arith.constant 1 : index
    %80 = memref.load %arg4[%c1_21] : memref<2xf32, #tpu.memory_space<smem>>
    memref.store %79, %arg4[%c1_21] : memref<2xf32, #tpu.memory_space<smem>>
    %c0_i32_22 = arith.constant 0 : i32
    %81 = arith.cmpi eq, %arg0, %c0_i32_22 : i32
    %82 = arith.extui %81 : i1 to i32
    %c0_i32_23 = arith.constant 0 : i32
    %83 = arith.cmpi ne, %82, %c0_i32_23 : i32
    scf.if %83 {
      %c0_24 = arith.constant 0 : index
      %84 = memref.load %arg1[%c0_24] : memref<2xf32, #tpu.memory_space<smem>>
      %c0_25 = arith.constant 0 : index
      %85 = memref.load %arg4[%c0_25] : memref<2xf32, #tpu.memory_space<smem>>
      %86 = arith.mulf %84, %85 : f32
      %cst_26 = arith.constant 0.000000e+00 : f32
      %87 = arith.addf %cst_26, %86 : f32
      %c1_27 = arith.constant 1 : index
      %88 = memref.load %arg1[%c1_27] : memref<2xf32, #tpu.memory_space<smem>>
      %c1_28 = arith.constant 1 : index
      %89 = memref.load %arg4[%c1_28] : memref<2xf32, #tpu.memory_space<smem>>
      %90 = arith.mulf %88, %89 : f32
      %91 = arith.addf %87, %90 : f32
      %cst_29 = arith.constant 8.000000e+00 : f32
      %92 = arith.divf %91, %cst_29 : f32
      %c0_30 = arith.constant 0 : index
      %93 = memref.load %arg3[%c0_30] : memref<1xf32, #tpu.memory_space<smem>>
      memref.store %92, %arg3[%c0_30] : memref<1xf32, #tpu.memory_space<smem>>
    } else {
    }
    return
  }
  func.func @transform_0(%arg0: i32) -> i32 {
    %c0_i32 = arith.constant 0 : i32
    %c0_i32_0 = arith.constant 0 : i32
    return %c0_i32 : i32
  }
  func.func @transform_1(%arg0: i32) -> (i32, i32) {
    %c0_i32 = arith.constant 0 : i32
    %c0_i32_0 = arith.constant 0 : i32
    return %c0_i32, %arg0 : i32, i32
  }
  func.func @transform_2(%arg0: i32) -> i32 {
    %c0_i32 = arith.constant 0 : i32
    %c0_i32_0 = arith.constant 0 : i32
    return %c0_i32 : i32
  }
}

</mosaic_0001>

<llo_original>
// kernel: tpu_custom_call.1
$region0: #{tpu_custom_call.1}
  #allocation0 [shape = 'u32[]', space=smem, size = 0x4, offset = 0x4, fixed_abs, tag = 'smem constant byte address 0x4 - core index']
  #allocation1 [shape = 'u32[144,128]{1,0:T(1,128)}', space=vmem, size = 0x12000, scoped, tag = 'internal scratch']
  #allocation2 [shape = 'f32[2]{0:T(128)}', space=smem, size = 0x200, scoped, tag = 'scratch operand']
  %s0 = inlined_call_operand.hbm [shape: f32[2], index: 0, kind: input, shape index: {}]
  %s1 = inlined_call_operand.hbm [shape: f32[14,128], index: 1, kind: input, shape index: {}]
  %s2 = inlined_call_operand.hbm [shape: f32[1], index: 2, kind: output, shape index: {}]
  %s3 = sld [smem:[#allocation0]]
  $region34: #{tpu_custom_call.1} parent=0
    _
  %s5 = ssub.s32 1, %s3
  %s6 = scalar_select 0, %s5, %s3
  $region1: #{tpu_custom_call.1} parent=0
    #allocation3 [shape = 'u8[512]{0}', space=smem, size = 0x200, scoped, tag = 'input window, operand 0, single buffered']
    #allocation4 [shape = 's32[1]{0}', space=sflag, size = 0x4, scoped, tag = 'scoped memory for tpu_custom_call.1']
    #allocation5 [shape = 's32[1]{0}', space=sflag, size = 0x4, scoped, tag = 'scoped memory for tpu_custom_call.1']
    #allocation6 [shape = 's32[1]{0}', space=sflag, size = 0x4, scoped, tag = 'scoped memory for tpu_custom_call.1']
    #allocation7 [shape = 'u8[8192]{0}', space=vmem, size = 0x2000, scoped, tag = 'input window, operand 1, single buffered']
    #allocation8 [shape = 'u8[512]{0}', space=smem, size = 0x200, scoped, tag = 'output window, operand 0, single buffered']
    %7 = vsyncpa [#allocation5], 0
    %8 = vsyncpa [#allocation4], 0
    %9 = vsyncpa [#allocation6], 0
    // Predicated region
    $region2: #{tpu_custom_call.1} parent=1 // pred_check
      _
    $region3: #{tpu_custom_call.1} parent=1 // pred_check_branch
      %11 = sbr.rel (0) target = $region5
    $region4: #{tpu_custom_call.1} parent=1 // pred_region
      %s13 = ssub.s32 16, 16
      %14 = vsyncadd [#allocation5], %s13
      %17 = dma.hbm_to_smem %s0, 16, [#allocation3], [#allocation5]
    $region5: #{tpu_custom_call.1} parent=1 // pred_fallthru
      _
    // Predicated region
    $region6: #{tpu_custom_call.1} parent=1 // pred_check
      _
    $region7: #{tpu_custom_call.1} parent=1 // pred_check_branch
      %19 = sbr.rel (0) target = $region9
    $region8: #{tpu_custom_call.1} parent=1 // pred_region
      %s21 = ssub.s32 256, 256
      %22 = vsyncadd [#allocation4], %s21
      %s23 = sshll.u32 [#allocation7], 4
      %s24 = int_to_ptr.vmem [resolvable:$true] %s23
      %29 = dma.hbm_to_vmem [thread:$0]  %s1, 256, %s24, [#allocation4], 128, 128, 8
    $region9: #{tpu_custom_call.1} parent=1 // pred_fallthru
      _
    // Predicated region
    $region10: #{tpu_custom_call.1} parent=1 // pred_check
      _
    $region11: #{tpu_custom_call.1} parent=1 // pred_check_branch
      %31 = sbr.rel (0) target = $region13
    $region12: #{tpu_custom_call.1} parent=1 // pred_region
      %32 = dma.done [#allocation5], 16
    $region13: #{tpu_custom_call.1} parent=1 // pred_fallthru
      _
    // Predicated region
    $region14: #{tpu_custom_call.1} parent=1 // pred_check
      _
    $region15: #{tpu_custom_call.1} parent=1 // pred_check_branch
      %34 = sbr.rel (0) target = $region17
    $region16: #{tpu_custom_call.1} parent=1 // pred_region
      %35 = dma.done [#allocation4], 256
    $region17: #{tpu_custom_call.1} parent=1 // pred_fallthru
      _
    %36 = sfence
    %p37 = scmp.eq.s32.totalorder 0, 0
    // Predicated region
    $region18: #{tpu_custom_call.1} parent=1 // pred_check
      %p38 = pneg %p37
    $region19: #{tpu_custom_call.1} parent=1 // pred_check_branch
      %40 = sbr.rel (%p38) target = $region21
    $region20: #{tpu_custom_call.1} parent=1 // pred_region
      %s41 = scalar_lea.smem [#allocation2], 0
      %42 = sst [smem:[%s41]] 0.0
      %s43 = scalar_lea.smem [#allocation2], 1
      %44 = sst [smem:[%s43]] 0.0
    $region21: #{tpu_custom_call.1} parent=1 // pred_fallthru
      _
    %v45 = vld [vmem:[#allocation7 + $0x3] sm:$0x7]
    %v46 = vld [vmem:[#allocation7] sm:$0x7]
    %v47 = vsub.f32 %v45, %v46
    %v48 = vand.u32 2147483647, %v47
    %vm49 = vcmp.lt.f32.partialorder %v48, 1.0
    %v50 = vmul.f32 %v47, 0.5
    %v51 = vmul.f32 %v50, %v47
    %v52 = vsub.f32 %v48, 0.5
    %v53 = vsel %vm49, %v51, %v52
    %s54 = sld [smem:[#allocation2]]
    %vm55 = vcmask 1042432
    %v56 = vsel %vm55, %v53, 0.0
    %57 = vadd.xlane.f32.xlu0 %v56
    %v58 = vpop.xlane.xlu0 %57
    %v59 = vrot.slane %v58, 4
    %v60 = vadd.f32 %v58, %v59
    %v61 = vrot.slane %v60, 2
    %v62 = vadd.f32 %v60, %v61
    %v63 = vrot.slane %v62, 1
    %v64 = vadd.f32 %v62, %v63
    %s65 = vtos %v64
    %s66 = sadd.f32 %s54, %s65
    %s67 = scalar_lea.smem [#allocation2], 0
    %68 = sst [smem:[%s67]] %s66
    %v69 = vld [vmem:[#allocation7 + $0x6] sm:$0x1]
    %v70 = vld [vmem:[#allocation7 + $0x7] sm:$0x1]
    %v71 = vsub.f32 0.0, %v70
    %v72 = vld [vmem:[#allocation7 + $0x8] sm:$0x1]
    %v73 = vsub.f32 0.0, %v72
    %v74 = vld [vmem:[#allocation7 + $0x9] sm:$0x1]
    %v75 = vsub.f32 0.0, %v74
    %v76 = vld [vmem:[#allocation7 + $0xa] sm:$0x1]
    %v77 = vld [vmem:[#allocation7 + $0xb] sm:$0x1]
    %v78 = vld [vmem:[#allocation7 + $0xc] sm:$0x1]
    %v79 = vld [vmem:[#allocation7 + $0xd] sm:$0x1]
    %v80 = vmul.f32 %v69, %v76
    %v81 = vmul.f32 %v71, %v77
    %v82 = vsub.f32 %v80, %v81
    %v83 = vmul.f32 %v73, %v78
    %v84 = vsub.f32 %v82, %v83
    %v85 = vmul.f32 %v75, %v79
    %v86 = vsub.f32 %v84, %v85
    %v87 = vmul.f32 %v69, %v77
    %v88 = vmul.f32 %v71, %v76
    %v89 = vadd.f32 %v87, %v88
    %v90 = vmul.f32 %v73, %v79
    %v91 = vsub.f32 %v89, %v90
    %v92 = vmul.f32 %v75, %v78
    %v93 = vadd.f32 %v91, %v92
    %v94 = vmul.f32 %v69, %v78
    %v95 = vmul.f32 %v71, %v79
    %v96 = vadd.f32 %v94, %v95
    %v97 = vmul.f32 %v73, %v76
    %v98 = vadd.f32 %v96, %v97
    %v99 = vmul.f32 %v75, %v77
    %v100 = vsub.f32 %v98, %v99
    %v101 = vmul.f32 %v69, %v79
    %v102 = vmul.f32 %v71, %v78
    %v103 = vsub.f32 %v101, %v102
    %v104 = vmul.f32 %v73, %v77
    %v105 = vadd.f32 %v103, %v104
    %v106 = vmul.f32 %v75, %v76
    %v107 = vadd.f32 %v105, %v106
    %v108 = vmul.f32 %v93, %v93
    %v109 = vmul.f32 %v100, %v100
    %v110 = vadd.f32 %v108, %v109
    %v111 = vmul.f32 %v107, %v107
    %v112 = vadd.f32 %v110, %v111
    %v113 = vrsqrt.pop %v112
    %v114 = vmul.f32 %v112, %v113
    %vm115 = vcmp.eq.f32.partialorder %v112, inf
    %v116 = vsel %vm115, %v112, %v114
    %vm117 = vcmp.eq.f32.partialorder %v112, 0.0
    %v118 = vand.u32 %v112, 2147483648
    %v119 = vsel %vm117, %v118, %v116
    %v120 = vand.u32 2147483647, %v86
    %v121 = vand.u32 2147483647, %v120
    %v122 = vand.u32 2147483647, %v119
    %v123 = vmin.f32 %v121, %v122
    %v124 = vmax.f32 %v121, %v122
    %v125 = vrcp.pop %v124
    %v126 = vmul.f32 %v123, %v125
    %v127 = vmul.f32 %v126, %v126
    %v128 = vmul.f32 0.002785687, %v127
    %v129 = vadd.f32 %v128, -0.015866
    %v130 = vmul.f32 %v129, %v127
    %v131 = vadd.f32 %v130, 0.04247222
    %v132 = vmul.f32 %v131, %v127
    %v133 = vadd.f32 %v132, -0.074975304
    %v134 = vmul.f32 %v133, %v127
    %v135 = vadd.f32 %v134, 0.1064488
    %v136 = vmul.f32 %v135, %v127
    %v137 = vadd.f32 %v136, -0.14207031
    %v138 = vmul.f32 %v137, %v127
    %v139 = vadd.f32 %v138, 0.19993454
    %v140 = vmul.f32 %v139, %v127
    %v141 = vadd.f32 %v140, -0.33333147
    %v142 = vmul.f32 %v141, %v127
    %v143 = vmul.f32 %v142, %v126
    %v144 = vadd.f32 %v143, %v126
    %vm145 = vcmp.gt.f32.partialorder %v122, %v121
    %v146 = vsub.f32 1.5707964, %v144
    %v147 = vsel %vm145, %v146, %v144
    %vm148 = vcmp.lt.f32.partialorder %v120, 0.0
    %v149 = vsub.f32 3.1415927, %v147
    %v150 = vsel %vm148, %v149, %v147
    %vm151 = vcmp.eq.f32.partialorder %v119, 0.0
    %v152 = vsel %vm151, 0.0, %v150
    %vm153 = vcmp.ne.f32.partialorder %v120, %v120
    %vm154 = vcmp.ne.f32.partialorder %v119, %v119
    %vm155 = vmor %vm153, %vm154
    %v156 = vsel %vm155, nan, %v152
    %vm157 = vcmp.lt.f32.partialorder %v120, 0.0
    %v158 = vsel %vm157, 2.3561945, 0.7853982
    %vm159 = vcmp.eq.s32.totalorder %v121, inf
    %vm160 = vcmp.eq.s32.totalorder %v122, inf
    %vm161 = vmand %vm159, %vm160
    %v162 = vsel %vm161, %v158, %v156
    %v163 = vand.u32 2147483647, %v162
    %v164 = vand.u32 %v119, 2147483648
    %v165 = vor.u32 %v163, %v164
    %v166 = vmul.f32 %v165, 2.0
    %s167 = sld [smem:[#allocation2 + $0x1]]
    %vm168 = vcmask 1040384
    %v169 = vsel %vm168, %v166, 0.0
    %170 = vadd.xlane.f32.xlu0 %v169
    %v171 = vpop.xlane.xlu0 %170
    %v172 = vrot.slane %v171, 4
    %v173 = vadd.f32 %v171, %v172
    %v174 = vrot.slane %v173, 2
    %v175 = vadd.f32 %v173, %v174
    %v176 = vrot.slane %v175, 1
    %v177 = vadd.f32 %v175, %v176
    %s178 = vtos %v177
    %s179 = sadd.f32 %s167, %s178
    %s180 = scalar_lea.smem [#allocation2], 1
    %181 = sst [smem:[%s180]] %s179
    // Predicated region
    $region22: #{tpu_custom_call.1} parent=1 // pred_check
      %p182 = pneg %p37
    $region23: #{tpu_custom_call.1} parent=1 // pred_check_branch
      %184 = sbr.rel (%p182) target = $region25
    $region24: #{tpu_custom_call.1} parent=1 // pred_region
      %s185 = sld [smem:[#allocation3]]
      %s186 = sld [smem:[#allocation2]]
      %s187 = smul.f32 %s185, %s186
      %s188 = sadd.f32 %s187, 0.0
      %s189 = sld [smem:[#allocation3 + $0x1]]
      %s190 = sld [smem:[#allocation2 + $0x1]]
      %s191 = smul.f32 %s189, %s190
      %s192 = sadd.f32 %s188, %s191
      %v193 = vrcp.pop 8.0
      %s194 = vtos %v193
      %s195 = smul.f32 %s192, %s194
      %s196 = scalar_lea.smem [#allocation8], 0
      %197 = sst [smem:[%s196]] %s195
    $region25: #{tpu_custom_call.1} parent=1 // pred_fallthru
      _
    // Predicated region
    $region26: #{tpu_custom_call.1} parent=1 // pred_check
      _
    $region27: #{tpu_custom_call.1} parent=1 // pred_check_branch
      %199 = sbr.rel (0) target = $region29
    $region28: #{tpu_custom_call.1} parent=1 // pred_region
      %s201 = ssub.s32 16, 16
      %202 = vsyncadd [#allocation6], %s201
      %205 = dma.smem_to_hbm [#allocation8], 16, %s2, [#allocation6]
    $region29: #{tpu_custom_call.1} parent=1 // pred_fallthru
      _
    // Predicated region
    $region30: #{tpu_custom_call.1} parent=1 // pred_check
      _
    $region31: #{tpu_custom_call.1} parent=1 // pred_check_branch
      %207 = sbr.rel (0) target = $region33
    $region32: #{tpu_custom_call.1} parent=1 // pred_region
      %208 = dma.done [#allocation6], 16
    $region33: #{tpu_custom_call.1} parent=1 // pred_fallthru
      _
    %209 = sfence
    %210 = vsyncpa [#allocation4], 1
    %211 = vsyncpa [#allocation5], 1
    %212 = vsyncpa [#allocation6], 1

</llo_original>
